<compile_context>
chip_gen: v7x
topology: tpu7x:2x2x1
jax: 0.10.0
libtpu: 0.0.40
codegen_flags: <defaults>
</compile_context>

<pallas_src>
from functools import partial

import jax
import jax.numpy as jnp
from jax.experimental import pallas as pl
from jax.experimental.pallas import tpu as pltpu

LANE = 128


def _round_up(n, m):
    return ((n + m - 1) // m) * m


def _cdiv(a, b):
    return -(-a // b)


# ------------------------------- kernel -------------------------------------

def dqn_kernel(x_ref, w1_ref, b1_ref, w2_ref, b2_ref, wh_ref, bh_ref, out_ref):
    # fc1 -> relu -> fc2 -> relu -> fused (V|A|pad) head.
    # bf16 operands into the MXU, f32 accumulation, f32 bias/relu on the VPU.
    h1 = jnp.dot(x_ref[...], w1_ref[...],
                 preferred_element_type=jnp.float32) + b1_ref[...]
    h1 = jnp.maximum(h1, 0.0).astype(jnp.bfloat16)
    h2 = jnp.dot(h1, w2_ref[...],
                 preferred_element_type=jnp.float32) + b2_ref[...]
    h2 = jnp.maximum(h2, 0.0).astype(jnp.bfloat16)
    out_ref[...] = (jnp.dot(h2, wh_ref[...],
                            preferred_element_type=jnp.float32)
                    + bh_ref[...]).astype(out_ref.dtype)


# --------------------------- one-time param prep ----------------------------

def prepare_dqn_params(params):
    """One-time prep (call once, reuse across forwards):
       fuse V|A into a lane-dense (128-padded) head, cast weights to bf16."""
    w1, b1 = params["fc1"]
    w2, b2 = params["fc2"]
    wv, bv = params["V"]
    wa, ba = params["A"]
    action_size = wa.shape[1]
    head_dim = 1 + action_size
    head_pad = _round_up(head_dim, LANE)
    head_w = jnp.pad(jnp.concatenate([wv, wa], axis=1),
                     ((0, 0), (0, head_pad - head_dim)))
    head_b = jnp.pad(jnp.concatenate([bv, ba], axis=1),
                     ((0, 0), (0, head_pad - head_dim)))
    prepped = {
        "w1": w1.astype(jnp.bfloat16), "b1": b1.astype(jnp.float32),
        "w2": w2.astype(jnp.bfloat16), "b2": b2.astype(jnp.float32),
        "wh": head_w.astype(jnp.bfloat16), "bh": head_b.astype(jnp.float32),
    }
    return prepped, action_size


# ------------------------------- forward ------------------------------------

def _choose_batch_tile(B):
    """Batch tile: minimal pad waste; >=2 grid steps when B > 256 (v7x cores);
       cap around 512 rows to keep the x/h1/h2/out tiles comfortably in VMEM."""
    TB_MAX = 512
    if B <= 256:
        return _round_up(B, 8)                 # single tile, no wasted rows
    n_tiles = max(2, _cdiv(B, TB_MAX))         # >=2 so both v7x TCs get work
    return _round_up(_cdiv(B, n_tiles), 8)


@partial(jax.jit, static_argnames=("action_size",))
def dqn_forward(x, prepped, *, action_size):
    """x: [B, state_size] f32. prepped: output of prepare_dqn_params.

    Returns (V [B, 1], A [B, action_size]) exactly like the PyTorch module.
    """
    B, state_size = x.shape
    w1, b1 = prepped["w1"], prepped["b1"]
    w2, b2 = prepped["w2"], prepped["b2"]
    wh, bh = prepped["wh"], prepped["bh"]
    hidden = w1.shape[1]
    head_pad = wh.shape[1]
    head_dim = 1 + action_size

    # Batch-scaled input goes to bf16 here (kernel consumes it directly).
    x = x.astype(jnp.bfloat16)

    # ---- Batch tiling ----
    TB = _choose_batch_tile(B)
    B_pad = _round_up(B, TB)
    if B_pad != B:
        x = jnp.pad(x, ((0, B_pad - B), (0, 0)))
    grid = (B_pad // TB,)

    tiled = lambda i: (i, 0)      # x / output tiles stream over the batch
    resident = lambda i: (0, 0)   # weights & biases stay in VMEM across steps

    flops = 2 * B_pad * (state_size * hidden + hidden * hidden
                         + hidden * head_pad)
    bytes_accessed = (x.size * 2                      # bf16 activations in
                      + (w1.size + w2.size + wh.size) * 2
                      + (b1.size + b2.size + bh.size) * 4
                      + B_pad * head_pad * 4)         # f32 fused-head out

    out = pl.pallas_call(
        dqn_kernel,
        out_shape=jax.ShapeDtypeStruct((B_pad, head_pad), jnp.float32),
        grid_spec=pltpu.PrefetchScalarGridSpec(
            num_scalar_prefetch=0,
            grid=grid,
            in_specs=[
                pl.BlockSpec((TB, state_size), tiled),
                pl.BlockSpec((state_size, hidden), resident),
                pl.BlockSpec((1, hidden), resident),
                pl.BlockSpec((hidden, hidden), resident),
                pl.BlockSpec((1, hidden), resident),
                pl.BlockSpec((hidden, head_pad), resident),
                pl.BlockSpec((1, head_pad), resident),
            ],
            out_specs=pl.BlockSpec((TB, head_pad), tiled),
        ),
        compiler_params=pltpu.CompilerParams(
            dimension_semantics=("parallel",)),
        cost_estimate=pl.CostEstimate(
            flops=flops, transcendentals=0, bytes_accessed=bytes_accessed),
    )(x, w1, b1, w2, b2, wh, bh)

    V = out[:B, 0:1]
    A = out[:B, 1:head_dim]
    return V, A


# ----------------------------- params / reference ---------------------------

def init_linear(key, in_features, out_features):
    """PyTorch nn.Linear default init: U(-1/sqrt(in), 1/sqrt(in))."""
    kw, kb = jax.random.split(key)
    bound = 1.0 / jnp.sqrt(jnp.float32(in_features))
    w = jax.random.uniform(kw, (in_features, out_features), jnp.float32,
                           minval=-bound, maxval=bound)   # already [in, out]
    b = jax.random.uniform(kb, (1, out_features), jnp.float32,
                           minval=-bound, maxval=bound)
    return w, b


def init_dqn_params(key, state_size, action_size, hidden_size):
    k1, k2, k3, k4 = jax.random.split(key, 4)
    return {
        "fc1": init_linear(k1, state_size, hidden_size),
        "fc2": init_linear(k2, hidden_size, hidden_size),
        "V":   init_linear(k3, hidden_size, 1),
        "A":   init_linear(k4, hidden_size, action_size),
    }


def dqn_reference_f32(x, params):
    h1 = jnp.maximum(x @ params["fc1"][0] + params["fc1"][1], 0.0)
    h2 = jnp.maximum(h1 @ params["fc2"][0] + params["fc2"][1], 0.0)
    V = h2 @ params["V"][0] + params["V"][1]
    A = h2 @ params["A"][0] + params["A"][1]
    return V, A


def dqn_reference_bf16(x, params):
    """Mirrors the kernel's bf16-operand / f32-accumulate arithmetic."""
    def mm(a, w):
        return jnp.dot(a.astype(jnp.bfloat16), w.astype(jnp.bfloat16),
                       preferred_element_type=jnp.float32)
    h1 = jnp.maximum(mm(x, params["fc1"][0]) + params["fc1"][1], 0.0)
    h2 = jnp.maximum(mm(h1, params["fc2"][0]) + params["fc2"][1], 0.0)
    V = mm(h2, params["V"][0]) + params["V"][1]
    A = mm(h2, params["A"][0]) + params["A"][1]
    return V, A


if __name__ == "__main__":
    # Small shapes consistent with the module (hidden_size shrunk from 512).
    batch, state_size, action_size, hidden_size = 8, 16, 4, 32

    key = jax.random.PRNGKey(0)
    kx, kp = jax.random.split(key)
    x = jax.random.normal(kx, (batch, state_size), jnp.float32)
    params = init_dqn_params(kp, state_size, action_size, hidden_size)

    # One-time weight prep (fused head, bf16 casts) -- reused across calls.
    prepped, asize = prepare_dqn_params(params)
    prepped = jax.block_until_ready(prepped)

    V, A = dqn_forward(x, prepped, action_size=asize)
    V, A = jax.block_until_ready((V, A))

    assert V.shape == (batch, 1) and A.shape == (batch, action_size)

    V_b, A_b = dqn_reference_bf16(x, params)
    assert jnp.allclose(V, V_b, atol=1e-3, rtol=1e-3)
    assert jnp.allclose(A, A_b, atol=1e-3, rtol=1e-3)

    V_f, A_f = dqn_reference_f32(x, params)
    assert jnp.allclose(V, V_f, atol=5e-2, rtol=5e-2)   # bf16-operand roundoff
    assert jnp.allclose(A, A_f, atol=5e-2, rtol=5e-2)

    print("KERNEL_OK")
</pallas_src>

<mosaic_0001>
module attributes {stable_mosaic.version = 11 : i64} {
  func.func @dqn_kernel(%arg0: i32, %arg1: memref<8x16xbf16, #tpu.memory_space<vmem>>, %arg2: memref<16x32xbf16, #tpu.memory_space<vmem>>, %arg3: memref<1x32xf32, #tpu.memory_space<vmem>>, %arg4: memref<32x32xbf16, #tpu.memory_space<vmem>>, %arg5: memref<1x32xf32, #tpu.memory_space<vmem>>, %arg6: memref<32x128xbf16, #tpu.memory_space<vmem>>, %arg7: memref<1x128xf32, #tpu.memory_space<vmem>>, %arg8: memref<8x128xf32, #tpu.memory_space<vmem>>) attributes {dimension_semantics = [#tpu.dimension_semantics<parallel>], iteration_bounds = array<i64: 1>, scalar_prefetch = 0 : i64, scratch_operands = 0 : i64, tpu.core_type = #tpu.core_type<tc>, window_params = [{transform_indices = @transform_0, window_bounds = array<i64: 8, 16>}, {pipeline_mode = #tpu.pipeline_mode<synchronous>, transform_indices = @transform_1, window_bounds = array<i64: 16, 32>}, {pipeline_mode = #tpu.pipeline_mode<synchronous>, transform_indices = @transform_2, window_bounds = array<i64: 1, 32>}, {pipeline_mode = #tpu.pipeline_mode<synchronous>, transform_indices = @transform_3, window_bounds = array<i64: 32, 32>}, {pipeline_mode = #tpu.pipeline_mode<synchronous>, transform_indices = @transform_4, window_bounds = array<i64: 1, 32>}, {pipeline_mode = #tpu.pipeline_mode<synchronous>, transform_indices = @transform_5, window_bounds = array<i64: 32, 128>}, {pipeline_mode = #tpu.pipeline_mode<synchronous>, transform_indices = @transform_6, window_bounds = array<i64: 1, 128>}, {transform_indices = @transform_7, window_bounds = array<i64: 8, 128>}]} {
    %c0 = arith.constant 0 : index
    %c0_0 = arith.constant 0 : index
    %0 = vector.load %arg1[%c0, %c0_0] : memref<8x16xbf16, #tpu.memory_space<vmem>>, vector<8x16xbf16>
    %c0_1 = arith.constant 0 : index
    %c0_2 = arith.constant 0 : index
    %1 = vector.load %arg2[%c0_1, %c0_2] : memref<16x32xbf16, #tpu.memory_space<vmem>>, vector<16x32xbf16>
    %cst = arith.constant dense<0.000000e+00> : vector<8x32xf32>
    %2 = tpu.matmul %0, %1, %cst {dimension_numbers = #tpu.dot_dimension_numbers<[1], [0], [0], [1], [0, 0, 1, 1], [], []>} : vector<8x16xbf16>, vector<16x32xbf16>, vector<8x32xf32> -> vector<8x32xf32>
    %c0_3 = arith.constant 0 : index
    %c0_4 = arith.constant 0 : index
    %3 = vector.load %arg3[%c0_3, %c0_4] : memref<1x32xf32, #tpu.memory_space<vmem>>, vector<1x32xf32>
    %4 = vector.broadcast %3 : vector<1x32xf32> to vector<8x32xf32>
    %5 = arith.addf %2, %4 : vector<8x32xf32>
    %cst_5 = arith.constant 0.000000e+00 : f32
    %6 = vector.broadcast %cst_5 : f32 to vector<8x32xf32>
    %7 = arith.maximumf %5, %6 : vector<8x32xf32>
    %8 = arith.truncf %7 : vector<8x32xf32> to vector<8x32xbf16>
    %c0_6 = arith.constant 0 : index
    %c0_7 = arith.constant 0 : index
    %9 = vector.load %arg4[%c0_6, %c0_7] : memref<32x32xbf16, #tpu.memory_space<vmem>>, vector<32x32xbf16>
    %cst_8 = arith.constant dense<0.000000e+00> : vector<8x32xf32>
    %10 = tpu.matmul %8, %9, %cst_8 {dimension_numbers = #tpu.dot_dimension_numbers<[1], [0], [0], [1], [0, 0, 1, 1], [], []>} : vector<8x32xbf16>, vector<32x32xbf16>, vector<8x32xf32> -> vector<8x32xf32>
    %c0_9 = arith.constant 0 : index
    %c0_10 = arith.constant 0 : index
    %11 = vector.load %arg5[%c0_9, %c0_10] : memref<1x32xf32, #tpu.memory_space<vmem>>, vector<1x32xf32>
    %12 = vector.broadcast %11 : vector<1x32xf32> to vector<8x32xf32>
    %13 = arith.addf %10, %12 : vector<8x32xf32>
    %cst_11 = arith.constant 0.000000e+00 : f32
    %14 = vector.broadcast %cst_11 : f32 to vector<8x32xf32>
    %15 = arith.maximumf %13, %14 : vector<8x32xf32>
    %16 = arith.truncf %15 : vector<8x32xf32> to vector<8x32xbf16>
    %c0_12 = arith.constant 0 : index
    %c0_13 = arith.constant 0 : index
    %17 = vector.load %arg6[%c0_12, %c0_13] : memref<32x128xbf16, #tpu.memory_space<vmem>>, vector<32x128xbf16>
    %cst_14 = arith.constant dense<0.000000e+00> : vector<8x128xf32>
    %18 = tpu.matmul %16, %17, %cst_14 {dimension_numbers = #tpu.dot_dimension_numbers<[1], [0], [0], [1], [0, 0, 1, 1], [], []>} : vector<8x32xbf16>, vector<32x128xbf16>, vector<8x128xf32> -> vector<8x128xf32>
    %c0_15 = arith.constant 0 : index
    %c0_16 = arith.constant 0 : index
    %19 = vector.load %arg7[%c0_15, %c0_16] : memref<1x128xf32, #tpu.memory_space<vmem>>, vector<1x128xf32>
    %20 = vector.broadcast %19 : vector<1x128xf32> to vector<8x128xf32>
    %21 = arith.addf %18, %20 : vector<8x128xf32>
    %c0_17 = arith.constant 0 : index
    %c0_18 = arith.constant 0 : index
    %22 = vector.load %arg8[%c0_17, %c0_18] : memref<8x128xf32, #tpu.memory_space<vmem>>, vector<8x128xf32>
    tpu.vector_store %arg8[%c0_17, %c0_18], %21 {strides = array<i32>} : memref<8x128xf32, #tpu.memory_space<vmem>>, vector<8x128xf32>,
    return
  }
  func.func @transform_0(%arg0: i32) -> (i32, i32) {
    %c0_i32 = arith.constant 0 : i32
    %c0_i32_0 = arith.constant 0 : i32
    return %arg0, %c0_i32 : i32, i32
  }
  func.func @transform_1(%arg0: i32) -> (i32, i32) {
    %c0_i32 = arith.constant 0 : i32
    %c0_i32_0 = arith.constant 0 : i32
    %c0_i32_1 = arith.constant 0 : i32
    return %c0_i32, %c0_i32_0 : i32, i32
  }
  func.func @transform_2(%arg0: i32) -> (i32, i32) {
    %c0_i32 = arith.constant 0 : i32
    %c0_i32_0 = arith.constant 0 : i32
    %c0_i32_1 = arith.constant 0 : i32
    return %c0_i32, %c0_i32_0 : i32, i32
  }
  func.func @transform_3(%arg0: i32) -> (i32, i32) {
    %c0_i32 = arith.constant 0 : i32
    %c0_i32_0 = arith.constant 0 : i32
    %c0_i32_1 = arith.constant 0 : i32
    return %c0_i32, %c0_i32_0 : i32, i32
  }
  func.func @transform_4(%arg0: i32) -> (i32, i32) {
    %c0_i32 = arith.constant 0 : i32
    %c0_i32_0 = arith.constant 0 : i32
    %c0_i32_1 = arith.constant 0 : i32
    return %c0_i32, %c0_i32_0 : i32, i32
  }
  func.func @transform_5(%arg0: i32) -> (i32, i32) {
    %c0_i32 = arith.constant 0 : i32
    %c0_i32_0 = arith.constant 0 : i32
    %c0_i32_1 = arith.constant 0 : i32
    return %c0_i32, %c0_i32_0 : i32, i32
  }
  func.func @transform_6(%arg0: i32) -> (i32, i32) {
    %c0_i32 = arith.constant 0 : i32
    %c0_i32_0 = arith.constant 0 : i32
    %c0_i32_1 = arith.constant 0 : i32
    return %c0_i32, %c0_i32_0 : i32, i32
  }
  func.func @transform_7(%arg0: i32) -> (i32, i32) {
    %c0_i32 = arith.constant 0 : i32
    %c0_i32_0 = arith.constant 0 : i32
    return %arg0, %c0_i32 : i32, i32
  }
}

</mosaic_0001>

<llo_original>
// kernel: dqn_forward.1
$region0: #{dqn_forward.1}
  #allocation0 [shape = 'u32[]', space=smem, size = 0x4, offset = 0x4, fixed_abs, tag = 'smem constant byte address 0x4 - core index']
  #allocation1 [shape = 'u32[144,128]{1,0:T(1,128)}', space=vmem, size = 0x12000, scoped, tag = 'internal scratch']
  %s0 = inlined_call_operand.vmem [shape: bf16[8,16], index: 0, kind: input, shape index: {}]
  %s1 = inlined_call_operand.hbm [shape: bf16[16,32], index: 1, kind: input, shape index: {}]
  %s2 = inlined_call_operand.vmem [shape: f32[1,32], index: 2, kind: input, shape index: {}]
  %s3 = inlined_call_operand.vmem [shape: bf16[32,32], index: 3, kind: input, shape index: {}]
  %s4 = inlined_call_operand.vmem [shape: f32[1,32], index: 4, kind: input, shape index: {}]
  %s5 = inlined_call_operand.vmem [shape: bf16[32,128], index: 5, kind: input, shape index: {}]
  %s6 = inlined_call_operand.hbm [shape: f32[1,128], index: 6, kind: input, shape index: {}]
  %s7 = inlined_call_operand.vmem [shape: f32[8,128], index: 7, kind: output, shape index: {}]
  %s8 = sld [smem:[#allocation0]]
  $region46: #{dqn_forward.1} parent=0
    _
  %s10 = ssub.s32 1, %s8
  %s11 = scalar_select 0, %s10, %s8
  $region1: #{dqn_forward.1} parent=0
    #allocation2 [shape = 'u8[4096]{0}', space=vmem, size = 0x1000, scoped, tag = 'input window, operand 1, single buffered']
    #allocation3 [shape = 's32[1]{0}', space=sflag, size = 0x4, scoped, tag = 'scoped memory for dqn_forward.1']
    #allocation4 [shape = 'u8[512]{0}', space=vmem, size = 0x400, scoped, tag = 'input window, operand 6, single buffered']
    #allocation5 [shape = 's32[1]{0}', space=sflag, size = 0x4, scoped, tag = 'scoped memory for dqn_forward.1']
    %12 = vsyncpa [#allocation3], 0
    %13 = vsyncpa [#allocation5], 0
    // Predicated region
    $region2: #{dqn_forward.1} parent=1 // pred_check
      _
    $region3: #{dqn_forward.1} parent=1 // pred_check_branch
      %15 = sbr.rel (0) target = $region5
    $region4: #{dqn_forward.1} parent=1 // pred_region
      _
    $region5: #{dqn_forward.1} parent=1 // pred_fallthru
      _
    // Predicated region
    $region6: #{dqn_forward.1} parent=1 // pred_check
      _
    $region7: #{dqn_forward.1} parent=1 // pred_check_branch
      %17 = sbr.rel (0) target = $region9
    $region8: #{dqn_forward.1} parent=1 // pred_region
      %s19 = ssub.s32 128, 128
      %20 = vsyncadd [#allocation3], %s19
      %s21 = sshll.u32 [#allocation2], 4
      %s22 = int_to_ptr.vmem [resolvable:$true] %s21
      %27 = dma.hbm_to_vmem [thread:$0]  %s1, 128, %s22, [#allocation3], 64, 64, 4
    $region9: #{dqn_forward.1} parent=1 // pred_fallthru
      _
    // Predicated region
    $region10: #{dqn_forward.1} parent=1 // pred_check
      _
    $region11: #{dqn_forward.1} parent=1 // pred_check_branch
      %29 = sbr.rel (0) target = $region13
    $region12: #{dqn_forward.1} parent=1 // pred_region
      _
    $region13: #{dqn_forward.1} parent=1 // pred_fallthru
      _
    // Predicated region
    $region14: #{dqn_forward.1} parent=1 // pred_check
      _
    $region15: #{dqn_forward.1} parent=1 // pred_check_branch
      %31 = sbr.rel (0) target = $region17
    $region16: #{dqn_forward.1} parent=1 // pred_region
      _
    $region17: #{dqn_forward.1} parent=1 // pred_fallthru
      _
    // Predicated region
    $region18: #{dqn_forward.1} parent=1 // pred_check
      _
    $region19: #{dqn_forward.1} parent=1 // pred_check_branch
      %33 = sbr.rel (0) target = $region21
    $region20: #{dqn_forward.1} parent=1 // pred_region
      _
    $region21: #{dqn_forward.1} parent=1 // pred_fallthru
      _
    // Predicated region
    $region22: #{dqn_forward.1} parent=1 // pred_check
      _
    $region23: #{dqn_forward.1} parent=1 // pred_check_branch
      %35 = sbr.rel (0) target = $region25
    $region24: #{dqn_forward.1} parent=1 // pred_region
      _
    $region25: #{dqn_forward.1} parent=1 // pred_fallthru
      _
    // Predicated region
    $region26: #{dqn_forward.1} parent=1 // pred_check
      _
    $region27: #{dqn_forward.1} parent=1 // pred_check_branch
      %37 = sbr.rel (0) target = $region29
    $region28: #{dqn_forward.1} parent=1 // pred_region
      %s39 = ssub.s32 16, 16
      %40 = vsyncadd [#allocation5], %s39
      %s42 = sshll.u32 [#allocation4], 4
      %s43 = int_to_ptr.vmem [resolvable:$true] %s42
      %45 = dma.hbm_to_vmem [thread:$0]  %s6, 16, %s43, [#allocation5]
    $region29: #{dqn_forward.1} parent=1 // pred_fallthru
      _
    // Predicated region
    $region30: #{dqn_forward.1} parent=1 // pred_check
      _
    $region31: #{dqn_forward.1} parent=1 // pred_check_branch
      %47 = sbr.rel (0) target = $region33
    $region32: #{dqn_forward.1} parent=1 // pred_region
      %48 = dma.done [#allocation3], 128
    $region33: #{dqn_forward.1} parent=1 // pred_fallthru
      _
    // Predicated region
    $region34: #{dqn_forward.1} parent=1 // pred_check
      _
    $region35: #{dqn_forward.1} parent=1 // pred_check_branch
      %50 = sbr.rel (0) target = $region37
    $region36: #{dqn_forward.1} parent=1 // pred_region
      %51 = dma.done [#allocation5], 16
    $region37: #{dqn_forward.1} parent=1 // pred_fallthru
      _
    %v53 = vld [vmem:[%s0] sm:$0xf]
    %v54 = vld [vmem:[#allocation2] sm:$0xf]
    %v55 = vld [vmem:[#allocation2 + $0x4] sm:$0xf]
    %v56 = vld [vmem:[%s2] sm:$0x1]
    %v58 = vlaneseq
    %v59 = vshrl.u32 %v58, 7
    %v60 = vsub.s32 0, %v59
    %v61 = vrot.slane %v56, %v60
    %v65 = vunpack.c.l.b16 %v54
    %v66 = vunpack.c.l.b16 %v55
    %v67 = vpack.c.b16 %v66, %v65
    %vm69 = vcmask 130048
    %v71 = vsel %vm69, %v53, 0
    %73 = vmatprep.subr.bf16.mxu0 0
    %74 = vmatpush1.bf16.msra.mxu0 %v67
    %75 = vmatprep.subr.bf16.mxu0 0
    %76 = vmatpush1.bf16.msra.mxu0 0
    %77 = vmatprep.subr.bf16.mxu0 0
    %78 = vmatpush1.bf16.msra.mxu0 0
    %79 = vmatprep.subr.bf16.mxu0 0
    %80 = vmatpush1.bf16.msra.mxu0 0
    %81 = vmatprep.subr.bf16.mxu0 0
    %82 = vmatpush1.bf16.msra.mxu0 0
    %83 = vmatprep.subr.bf16.mxu0 0
    %84 = vmatpush1.bf16.msra.mxu0 0
    %85 = vmatprep.subr.bf16.mxu0 0
    %86 = vmatpush1.bf16.msra.mxu0 0
    %87 = vmatprep.subr.bf16.mxu0 0
    %88 = vmatpush1.bf16.msra.mxu0 0
    %89 = vmatprep.subr.bf16.mxu0 0
    %90 = vmatpush1.bf16.msra.mxu0 0
    %91 = vmatprep.subr.bf16.mxu0 0
    %92 = vmatpush1.bf16.msra.mxu0 0
    %93 = vmatprep.subr.bf16.mxu0 0
    %94 = vmatpush1.bf16.msra.mxu0 0
    %95 = vmatprep.subr.bf16.mxu0 0
    %96 = vmatpush1.bf16.msra.mxu0 0
    %97 = vmatprep.subr.bf16.mxu0 0
    %98 = vmatpush1.bf16.msra.mxu0 0
    %99 = vmatprep.subr.bf16.mxu0 0
    %100 = vmatpush1.bf16.msra.mxu0 0
    %101 = vmatprep.subr.bf16.mxu0 0
    %102 = vmatpush1.bf16.msra.mxu0 0
    %103 = vmatprep.subr.bf16.mxu0 0
    %104 = vmatpush1.bf16.msra.mxu0 0
    %105 = vmatprep.mubr.bf16.mxu0 0
    %106 = vmatmul.mubr.bf16.gmra.mrb[0].mxu0 %v71
    %v107 = vpop.f32.mrb[0].mxu0
    %v108 = vadd.f32 %v61, %v107
    %v109 = vpop.f32.mrb[0].mxu0
    %v110 = vpop.f32.mrb[0].mxu0
    %v111 = vpop.f32.mrb[0].mxu0
    %112 = vdwg.mxu0
    %v113 = vmax.f32 %v108, 0.0
    %v114 = vpack.c.bf16 %v113, %v113
    %v115 = vld [vmem:[%s3] sm:$0xf]
    %v116 = vld [vmem:[%s3 + $0x4] sm:$0xf]
    %v117 = vld [vmem:[%s3 + $0x8] sm:$0xf]
    %v118 = vld [vmem:[%s3 + $0xc] sm:$0xf]
    %v119 = vld [vmem:[%s4] sm:$0x1]
    %v121 = vlaneseq
    %v122 = vshrl.u32 %v121, 7
    %v123 = vsub.s32 0, %v122
    %v124 = vrot.slane %v119, %v123
    %v130 = vunpack.c.l.b16 %v115
    %v131 = vunpack.c.l.b16 %v116
    %v132 = vunpack.c.l.b16 %v117
    %v133 = vunpack.c.l.b16 %v118
    %v134 = vpack.c.b16 %v131, %v130
    %v135 = vpack.c.b16 %v133, %v132
    %vm138 = vcmask 261120
    %v140 = vsel %vm138, %v114, 0
    %142 = vmatprep.subr.bf16.mxu0 0
    %143 = vmatpush1.bf16.msra.mxu0 %v134
    %144 = vmatprep.subr.bf16.mxu0 0
    %145 = vmatpush1.bf16.msra.mxu0 %v135
    %146 = vmatprep.subr.bf16.mxu0 0
    %147 = vmatpush1.bf16.msra.mxu0 0
    %148 = vmatprep.subr.bf16.mxu0 0
    %149 = vmatpush1.bf16.msra.mxu0 0
    %150 = vmatprep.subr.bf16.mxu0 0
    %151 = vmatpush1.bf16.msra.mxu0 0
    %152 = vmatprep.subr.bf16.mxu0 0
    %153 = vmatpush1.bf16.msra.mxu0 0
    %154 = vmatprep.subr.bf16.mxu0 0
    %155 = vmatpush1.bf16.msra.mxu0 0
    %156 = vmatprep.subr.bf16.mxu0 0
    %157 = vmatpush1.bf16.msra.mxu0 0
    %158 = vmatprep.subr.bf16.mxu0 0
    %159 = vmatpush1.bf16.msra.mxu0 0
    %160 = vmatprep.subr.bf16.mxu0 0
    %161 = vmatpush1.bf16.msra.mxu0 0
    %162 = vmatprep.subr.bf16.mxu0 0
    %163 = vmatpush1.bf16.msra.mxu0 0
    %164 = vmatprep.subr.bf16.mxu0 0
    %165 = vmatpush1.bf16.msra.mxu0 0
    %166 = vmatprep.subr.bf16.mxu0 0
    %167 = vmatpush1.bf16.msra.mxu0 0
    %168 = vmatprep.subr.bf16.mxu0 0
    %169 = vmatpush1.bf16.msra.mxu0 0
    %170 = vmatprep.subr.bf16.mxu0 0
    %171 = vmatpush1.bf16.msra.mxu0 0
    %172 = vmatprep.subr.bf16.mxu0 0
    %173 = vmatpush1.bf16.msra.mxu0 0
    %174 = vmatprep.mubr.bf16.mxu0 0
    %175 = vmatmul.mubr.bf16.gmra.mrb[0].mxu0 %v140
    %v176 = vpop.f32.mrb[0].mxu0
    %v177 = vadd.f32 %v124, %v176
    %v178 = vpop.f32.mrb[0].mxu0
    %v179 = vpop.f32.mrb[0].mxu0
    %v180 = vpop.f32.mrb[0].mxu0
    %181 = vdwg.mxu0
    %v182 = vmax.f32 %v177, 0.0
    %v183 = vpack.c.bf16 %v182, %v182
    %v184 = vld [vmem:[%s5] sm:$0xf]
    %v185 = vld [vmem:[%s5 + $0x4] sm:$0xf]
    %v186 = vld [vmem:[%s5 + $0x8] sm:$0xf]
    %v187 = vld [vmem:[%s5 + $0xc] sm:$0xf]
    %v188 = vld [vmem:[#allocation4] sm:$0x1]
    %v190 = vlaneseq
    %v191 = vshrl.u32 %v190, 7
    %v192 = vsub.s32 0, %v191
    %v193 = vrot.slane %v188, %v192
    %v199 = vunpack.c.l.b16 %v184
    %v200 = vunpack.c.l.b16 %v185
    %v201 = vunpack.c.l.b16 %v186
    %v202 = vunpack.c.l.b16 %v187
    %v203 = vpack.c.b16 %v200, %v199
    %v204 = vpack.c.b16 %v202, %v201
    %v208 = vsel %vm138, %v183, 0
    %210 = vmatprep.subr.bf16.mxu0 0
    %211 = vmatpush1.bf16.msra.mxu0 %v203
    %212 = vmatprep.subr.bf16.mxu0 0
    %213 = vmatpush1.bf16.msra.mxu0 %v204
    %214 = vmatprep.subr.bf16.mxu0 0
    %215 = vmatpush1.bf16.msra.mxu0 0
    %216 = vmatprep.subr.bf16.mxu0 0
    %217 = vmatpush1.bf16.msra.mxu0 0
    %218 = vmatprep.subr.bf16.mxu0 0
    %219 = vmatpush1.bf16.msra.mxu0 0
    %220 = vmatprep.subr.bf16.mxu0 0
    %221 = vmatpush1.bf16.msra.mxu0 0
    %222 = vmatprep.subr.bf16.mxu0 0
    %223 = vmatpush1.bf16.msra.mxu0 0
    %224 = vmatprep.subr.bf16.mxu0 0
    %225 = vmatpush1.bf16.msra.mxu0 0
    %226 = vmatprep.subr.bf16.mxu0 0
    %227 = vmatpush1.bf16.msra.mxu0 0
    %228 = vmatprep.subr.bf16.mxu0 0
    %229 = vmatpush1.bf16.msra.mxu0 0
    %230 = vmatprep.subr.bf16.mxu0 0
    %231 = vmatpush1.bf16.msra.mxu0 0
    %232 = vmatprep.subr.bf16.mxu0 0
    %233 = vmatpush1.bf16.msra.mxu0 0
    %234 = vmatprep.subr.bf16.mxu0 0
    %235 = vmatpush1.bf16.msra.mxu0 0
    %236 = vmatprep.subr.bf16.mxu0 0
    %237 = vmatpush1.bf16.msra.mxu0 0
    %238 = vmatprep.subr.bf16.mxu0 0
    %239 = vmatpush1.bf16.msra.mxu0 0
    %240 = vmatprep.subr.bf16.mxu0 0
    %241 = vmatpush1.bf16.msra.mxu0 0
    %242 = vmatprep.mubr.bf16.mxu0 0
    %243 = vmatmul.mubr.bf16.gmra.mrb[0].mxu0 %v208
    %v244 = vpop.f32.mrb[0].mxu0
    %v245 = vadd.f32 %v193, %v244
    %v246 = vpop.f32.mrb[0].mxu0
    %v247 = vpop.f32.mrb[0].mxu0
    %v248 = vpop.f32.mrb[0].mxu0
    %249 = vdwg.mxu0
    %250 = vst [vmem:[%s7] sm:$0xff] %v245
    // Predicated region
    $region38: #{dqn_forward.1} parent=1 // pred_check
      _
    $region39: #{dqn_forward.1} parent=1 // pred_check_branch
      %252 = sbr.rel (0) target = $region41
    $region40: #{dqn_forward.1} parent=1 // pred_region
      _
    $region41: #{dqn_forward.1} parent=1 // pred_fallthru
      _
    // Predicated region
    $region42: #{dqn_forward.1} parent=1 // pred_check
      _
    $region43: #{dqn_forward.1} parent=1 // pred_check_branch
      %254 = sbr.rel (0) target = $region45
    $region44: #{dqn_forward.1} parent=1 // pred_region
      _
    $region45: #{dqn_forward.1} parent=1 // pred_fallthru
      _
    %255 = vsyncpa [#allocation3], 1
    %256 = vsyncpa [#allocation5], 1

</llo_original>
